<compile_context>
chip_gen: v7x
topology: tpu7x:2x2x1
jax: 0.10.0
libtpu: 0.0.40
codegen_flags: <defaults>
</compile_context>

<pallas_src>
import functools

import jax
import jax.numpy as jnp
from jax.experimental import pallas as pl
from jax.experimental.pallas import tpu as pltpu


# ---------------------------------------------------------------------------
# Fused Pallas kernel: merged p/q conv stream + lane-dense SSE partials
# ---------------------------------------------------------------------------

def _feature_match_kernel(p_ref, q_ref,
                          w1_ref, b1_ref, w2_ref, b2_ref, w3_ref, b3_ref,
                          sse_ref, *, compute_out):
    # p_ref/q_ref: (Cin, T)   channels on sublanes, spatial lanes (lane-dense)
    # wK_ref:      (CK, CK-1) pre-transposed weights (resident in VMEM)
    # bK_ref:      (CK, 1)
    # sse_ref:     (8, T)     rows 0..2 = per-lane SSE partials for f1, f2, out
    t = p_ref.shape[-1]

    @pl.when(pl.program_id(1) == 0)
    def _():
        sse_ref[...] = jnp.zeros_like(sse_ref)

    # Merge the two branches into one matmul stream: p lanes [0:T), q lanes [T:2T).
    x = jnp.concatenate([p_ref[...], q_ref[...]], axis=-1).astype(jnp.float32)

    w1 = w1_ref[...]
    b1 = b1_ref[...]
    w2 = w2_ref[...]
    b2 = b2_ref[...]

    # (C1, 2T) and (C2, 2T) hidden features — lane-dense, f32 accumulation.
    f1 = jnp.maximum(
        jnp.dot(w1, x, preferred_element_type=jnp.float32) + b1, 0.0)
    f2 = jnp.maximum(
        jnp.dot(w2, f1, preferred_element_type=jnp.float32) + b2, 0.0)

    # Sublane-only reductions -> (1, T) per-lane partial sums (no scalar reduce,
    # no iota/where scatter in the per-step tail).
    d1 = f1[:, :t] - f1[:, t:]
    d2 = f2[:, :t] - f2[:, t:]
    s1 = jnp.sum(d1 * d1, axis=0, keepdims=True)
    s2 = jnp.sum(d2 * d2, axis=0, keepdims=True)

    if compute_out:
        w3 = w3_ref[...]
        b3 = b3_ref[...]
        out = jnp.dot(w3, f2, preferred_element_type=jnp.float32) + b3
        do = out[:, :t] - out[:, t:]
        s3 = jnp.sum(do * do, axis=0, keepdims=True)
    else:
        s3 = jnp.zeros_like(s1)

    pad = jnp.zeros((sse_ref.shape[0] - 3, t), jnp.float32)
    sse_ref[...] += jnp.concatenate([s1, s2, s3, pad], axis=0)


# ---------------------------------------------------------------------------
# Tiling / wrapper
# ---------------------------------------------------------------------------

_MAX_LANE_TILE = 4096          # ~1 KB of live f32 intermediates per lane
_VMEM_LIMIT_BYTES = 48 * 1024 * 1024   # safe on v7x (64 MiB), raises v5e/v6e defaults


def _pick_lane_tile(hw, max_lanes=_MAX_LANE_TILE):
    """Lane tile (multiple of 128) and the padded spatial extent it divides."""
    hwp = ((hw + 127) // 128) * 128
    t = min(max_lanes, hwp)
    t = (t // 128) * 128
    hwpp = ((hwp + t - 1) // t) * t
    return t, hwpp


def _fused_sse(p3, q3, w1t, b1c, w2t, b2c, w3t, b3c, lane_tile, compute_out):
    """One fused pallas_call; returns (sse_f1, sse_f2, sse_out)."""
    n, cin, hwpp = p3.shape
    c1 = w1t.shape[0]
    c2 = w2t.shape[0]
    c3 = w3t.shape[0]
    n_t = hwpp // lane_tile

    kernel = functools.partial(_feature_match_kernel, compute_out=compute_out)

    sse = pl.pallas_call(
        kernel,
        out_shape=jax.ShapeDtypeStruct((n, 8, lane_tile), jnp.float32),
        grid_spec=pltpu.PrefetchScalarGridSpec(
            num_scalar_prefetch=0,
            grid=(n, n_t),
            in_specs=[
                # spatial-lane tiles of p and q (channels-first, no transpose)
                pl.BlockSpec((None, cin, lane_tile), lambda i, j: (i, 0, j)),
                pl.BlockSpec((None, cin, lane_tile), lambda i, j: (i, 0, j)),
                # weights / biases: tiny constant-index blocks, VMEM-resident
                pl.BlockSpec((c1, cin), lambda i, j: (0, 0)),
                pl.BlockSpec((c1, 1), lambda i, j: (0, 0)),
                pl.BlockSpec((c2, c1), lambda i, j: (0, 0)),
                pl.BlockSpec((c2, 1), lambda i, j: (0, 0)),
                pl.BlockSpec((c3, c2), lambda i, j: (0, 0)),
                pl.BlockSpec((c3, 1), lambda i, j: (0, 0)),
            ],
            # Per-batch partial-sum block: accumulates over the lane-tile axis,
            # independent (parallel) over the batch axis -> usable by 2 TCs on v7x.
            out_specs=pl.BlockSpec((None, 8, lane_tile), lambda i, j: (i, 0, 0)),
        ),
        compiler_params=pltpu.CompilerParams(
            dimension_semantics=("parallel", "arbitrary"),
            vmem_limit_bytes=_VMEM_LIMIT_BYTES,
        ),
    )(p3, q3, w1t, b1c, w2t, b2c, w3t, b3c)

    # Tiny cross-lane/cross-batch sums in the JAX epilogue.
    return jnp.sum(sse[:, 0, :]), jnp.sum(sse[:, 1, :]), jnp.sum(sse[:, 2, :])


def feature_match_forward(p, q, params, *, weights=(1.0, 0.5), out_wt=2.0,
                          reduction="mean"):
    """Mirrors Feature_Match.forward with criterion=mse, out_criterion=None."""
    # TODO(synk): the reference module hooks arbitrary user-specified layers of an
    # arbitrary model; here the hooked layers are fixed to the two hidden
    # 1x1-conv+ReLU blocks of the synthetic model fused into the kernel above.
    n, c, h, w = p.shape
    hw = h * w
    m = n * hw

    # Free reshape: NCHW -> (N, C, H*W); H*W goes on the lane axis.
    p3 = p.reshape(n, c, hw)
    q3 = q.reshape(n, c, hw)

    lane_tile, hwpp = _pick_lane_tile(hw)
    if hwpp != hw:
        # Zero padding: identical features for both branches on padded lanes
        # -> exactly zero SSE contribution.
        cfg = ((0, 0), (0, 0), (0, hwpp - hw))
        p3 = jnp.pad(p3, cfg)
        q3 = jnp.pad(q3, cfg)

    # Channels-first weights (Cout, Cin) and column biases (Cout, 1).
    w1t = params["w1"].T
    w2t = params["w2"].T
    w3t = params["w3"].T
    b1c = params["b1"].reshape(-1, 1)
    b2c = params["b2"].reshape(-1, 1)
    b3c = params["b3"].reshape(-1, 1)

    compute_out = (out_wt is not None) and (out_wt > 0)

    sse1, sse2, sse_out = _fused_sse(p3, q3, w1t, b1c, w2t, b2c, w3t, b3c,
                                     lane_tile, compute_out)

    c1 = params["w1"].shape[1]
    c2 = params["w2"].shape[1]
    c3 = params["w3"].shape[1]

    losses = [jnp.float32(weights[0]) * (sse1 / jnp.float32(m * c1)),
              jnp.float32(weights[1]) * (sse2 / jnp.float32(m * c2))]
    if compute_out:
        losses.append(jnp.float32(out_wt) * (sse_out / jnp.float32(m * c3)))

    if reduction == "none":
        return losses
    loss = sum(losses)
    if reduction == "mean":
        return loss / jnp.float32(len(losses))
    return loss


# ---------------------------------------------------------------------------
# Pure-JAX reference (correctness check)
# ---------------------------------------------------------------------------

def nchw_to_rows(x):
    n, c, h, w = x.shape
    return jnp.transpose(x, (0, 2, 3, 1)).reshape(n * h * w, c)


def _ref_forward(p, q, params, weights=(1.0, 0.5), out_wt=2.0):
    def model(x):
        f1 = jnp.maximum(x @ params["w1"] + params["b1"], 0.0)
        f2 = jnp.maximum(f1 @ params["w2"] + params["b2"], 0.0)
        out = f2 @ params["w3"] + params["b3"]
        return out, [f1, f2]

    p_rows, q_rows = nchw_to_rows(p), nchw_to_rows(q)
    po, pfs = model(p_rows)
    qo, qfs = model(q_rows)
    losses = [w * jnp.mean((a - b) ** 2) for w, a, b in zip(weights, pfs, qfs)]
    losses.append(out_wt * jnp.mean((po - qo) ** 2))
    return sum(losses) / len(losses)


# ---------------------------------------------------------------------------
# Main
# ---------------------------------------------------------------------------

if __name__ == "__main__":
    key = jax.random.PRNGKey(0)
    kp, kq, k1, k2, k3, kb1, kb2, kb3 = jax.random.split(key, 8)

    N, C, H, W = 2, 4, 16, 16        # PyTorch NCHW input shape: [2, 4, 16, 16]
    C1, C2, COUT = 32, 32, 8

    p = jax.random.normal(kp, (N, C, H, W), jnp.float32)
    q = jax.random.normal(kq, (N, C, H, W), jnp.float32)

    params = {
        "w1": 0.2 * jax.random.normal(k1, (C, C1), jnp.float32),
        "b1": 0.1 * jax.random.normal(kb1, (1, C1), jnp.float32),
        "w2": 0.2 * jax.random.normal(k2, (C1, C2), jnp.float32),
        "b2": 0.1 * jax.random.normal(kb2, (1, C2), jnp.float32),
        "w3": 0.2 * jax.random.normal(k3, (C2, COUT), jnp.float32),
        "b3": 0.1 * jax.random.normal(kb3, (1, COUT), jnp.float32),
    }

    loss = feature_match_forward(p, q, params)
    loss = jax.block_until_ready(loss)

    ref = jax.block_until_ready(_ref_forward(p, q, params))
    assert jnp.allclose(loss, ref, rtol=1e-5, atol=1e-6), (loss, ref)

    print("KERNEL_OK")
</pallas_src>

<mosaic_0001>
module attributes {stable_mosaic.version = 11 : i64} {
  func.func @_feature_match_kernel(%arg0: i32, %arg1: i32, %arg2: memref<1x4x256xf32, #tpu.memory_space<vmem>>, %arg3: memref<1x4x256xf32, #tpu.memory_space<vmem>>, %arg4: memref<32x4xf32, #tpu.memory_space<vmem>>, %arg5: memref<32x1xf32, #tpu.memory_space<vmem>>, %arg6: memref<32x32xf32, #tpu.memory_space<vmem>>, %arg7: memref<32x1xf32, #tpu.memory_space<vmem>>, %arg8: memref<8x32xf32, #tpu.memory_space<vmem>>, %arg9: memref<8x1xf32, #tpu.memory_space<vmem>>, %arg10: memref<1x8x256xf32, #tpu.memory_space<vmem>>) attributes {dimension_semantics = [#tpu.dimension_semantics<parallel>, #tpu.dimension_semantics<arbitrary>], iteration_bounds = array<i64: 2, 1>, scalar_prefetch = 0 : i64, scratch_operands = 0 : i64, tpu.core_type = #tpu.core_type<tc>, window_params = [{transform_indices = @transform_0, window_bounds = array<i64: 1, 4, 256>}, {transform_indices = @transform_1, window_bounds = array<i64: 1, 4, 256>}, {pipeline_mode = #tpu.pipeline_mode<synchronous>, transform_indices = @transform_2, window_bounds = array<i64: 32, 4>}, {pipeline_mode = #tpu.pipeline_mode<synchronous>, transform_indices = @transform_3, window_bounds = array<i64: 32, 1>}, {pipeline_mode = #tpu.pipeline_mode<synchronous>, transform_indices = @transform_4, window_bounds = array<i64: 32, 32>}, {pipeline_mode = #tpu.pipeline_mode<synchronous>, transform_indices = @transform_5, window_bounds = array<i64: 32, 1>}, {pipeline_mode = #tpu.pipeline_mode<synchronous>, transform_indices = @transform_6, window_bounds = array<i64: 8, 32>}, {pipeline_mode = #tpu.pipeline_mode<synchronous>, transform_indices = @transform_7, window_bounds = array<i64: 8, 1>}, {transform_indices = @transform_8, window_bounds = array<i64: 1, 8, 256>}]} {
    %c0_i32 = arith.constant 0 : i32
    %0 = arith.cmpi eq, %arg1, %c0_i32 : i32
    %1 = arith.extui %0 : i1 to i32
    %c0_i32_0 = arith.constant 0 : i32
    %2 = arith.cmpi ne, %1, %c0_i32_0 : i32
    scf.if %2 {
      %cst_32 = arith.constant 0.000000e+00 : f32
      %53 = vector.broadcast %cst_32 : f32 to vector<8x256xf32>
      %c0_33 = arith.constant 0 : index
      %c0_34 = arith.constant 0 : index
      %c0_35 = arith.constant 0 : index
      %54 = vector.load %arg10[%c0_33, %c0_34, %c0_35] : memref<1x8x256xf32, #tpu.memory_space<vmem>>, vector<1x8x256xf32>
      %55 = vector.shape_cast %54 : vector<1x8x256xf32> to vector<8x256xf32>
      %56 = vector.shape_cast %53 : vector<8x256xf32> to vector<1x8x256xf32>
      tpu.vector_store %arg10[%c0_33, %c0_34, %c0_35], %56 {strides = array<i32>} : memref<1x8x256xf32, #tpu.memory_space<vmem>>, vector<1x8x256xf32>,
    } else {
    }
    %c0 = arith.constant 0 : index
    %c0_1 = arith.constant 0 : index
    %c0_2 = arith.constant 0 : index
    %3 = vector.load %arg2[%c0, %c0_1, %c0_2] : memref<1x4x256xf32, #tpu.memory_space<vmem>>, vector<1x4x256xf32>
    %4 = vector.shape_cast %3 : vector<1x4x256xf32> to vector<4x256xf32>
    %c0_3 = arith.constant 0 : index
    %c0_4 = arith.constant 0 : index
    %c0_5 = arith.constant 0 : index
    %5 = vector.load %arg3[%c0_3, %c0_4, %c0_5] : memref<1x4x256xf32, #tpu.memory_space<vmem>>, vector<1x4x256xf32>
    %6 = vector.shape_cast %5 : vector<1x4x256xf32> to vector<4x256xf32>
    %7 = tpu.concatenate %4, %6 in 1 : vector<4x256xf32>, vector<4x256xf32> -> vector<4x512xf32>
    %c0_6 = arith.constant 0 : index
    %c0_7 = arith.constant 0 : index
    %8 = vector.load %arg4[%c0_6, %c0_7] : memref<32x4xf32, #tpu.memory_space<vmem>>, vector<32x4xf32>
    %c0_8 = arith.constant 0 : index
    %c0_9 = arith.constant 0 : index
    %9 = vector.load %arg5[%c0_8, %c0_9] : memref<32x1xf32, #tpu.memory_space<vmem>>, vector<32x1xf32>
    %c0_10 = arith.constant 0 : index
    %c0_11 = arith.constant 0 : index
    %10 = vector.load %arg6[%c0_10, %c0_11] : memref<32x32xf32, #tpu.memory_space<vmem>>, vector<32x32xf32>
    %c0_12 = arith.constant 0 : index
    %c0_13 = arith.constant 0 : index
    %11 = vector.load %arg7[%c0_12, %c0_13] : memref<32x1xf32, #tpu.memory_space<vmem>>, vector<32x1xf32>
    %cst = arith.constant dense<0.000000e+00> : vector<32x512xf32>
    %12 = tpu.matmul %8, %7, %cst {dimension_numbers = #tpu.dot_dimension_numbers<[1], [0], [0], [1], [0, 0, 1, 1], [], []>} : vector<32x4xf32>, vector<4x512xf32>, vector<32x512xf32> -> vector<32x512xf32>
    %13 = vector.broadcast %9 : vector<32x1xf32> to vector<32x512xf32>
    %14 = arith.addf %12, %13 : vector<32x512xf32>
    %cst_14 = arith.constant 0.000000e+00 : f32
    %15 = vector.broadcast %cst_14 : f32 to vector<32x512xf32>
    %16 = arith.maximumf %14, %15 : vector<32x512xf32>
    %cst_15 = arith.constant dense<0.000000e+00> : vector<32x512xf32>
    %17 = tpu.matmul %10, %16, %cst_15 {dimension_numbers = #tpu.dot_dimension_numbers<[1], [0], [0], [1], [0, 0, 1, 1], [], []>} : vector<32x32xf32>, vector<32x512xf32>, vector<32x512xf32> -> vector<32x512xf32>
    %18 = vector.broadcast %11 : vector<32x1xf32> to vector<32x512xf32>
    %19 = arith.addf %17, %18 : vector<32x512xf32>
    %cst_16 = arith.constant 0.000000e+00 : f32
    %20 = vector.broadcast %cst_16 : f32 to vector<32x512xf32>
    %21 = arith.maximumf %19, %20 : vector<32x512xf32>
    %22 = vector.extract_strided_slice %16 {offsets = [0, 0], sizes = [32, 256], strides = [1, 1]} : vector<32x512xf32> to vector<32x256xf32>
    %23 = vector.extract_strided_slice %16 {offsets = [0, 256], sizes = [32, 256], strides = [1, 1]} : vector<32x512xf32> to vector<32x256xf32>
    %24 = arith.subf %22, %23 : vector<32x256xf32>
    %25 = vector.extract_strided_slice %21 {offsets = [0, 0], sizes = [32, 256], strides = [1, 1]} : vector<32x512xf32> to vector<32x256xf32>
    %26 = vector.extract_strided_slice %21 {offsets = [0, 256], sizes = [32, 256], strides = [1, 1]} : vector<32x512xf32> to vector<32x256xf32>
    %27 = arith.subf %25, %26 : vector<32x256xf32>
    %28 = arith.mulf %24, %24 : vector<32x256xf32>
    %cst_17 = arith.constant dense<0.000000e+00> : vector<256xf32>
    %29 = vector.multi_reduction <add>, %28, %cst_17 [0] : vector<32x256xf32> to vector<256xf32>
    %30 = vector.shape_cast %29 : vector<256xf32> to vector<1x256xf32>
    %31 = arith.mulf %27, %27 : vector<32x256xf32>
    %cst_18 = arith.constant dense<0.000000e+00> : vector<256xf32>
    %32 = vector.multi_reduction <add>, %31, %cst_18 [0] : vector<32x256xf32> to vector<256xf32>
    %33 = vector.shape_cast %32 : vector<256xf32> to vector<1x256xf32>
    %c0_19 = arith.constant 0 : index
    %c0_20 = arith.constant 0 : index
    %34 = vector.load %arg8[%c0_19, %c0_20] : memref<8x32xf32, #tpu.memory_space<vmem>>, vector<8x32xf32>
    %c0_21 = arith.constant 0 : index
    %c0_22 = arith.constant 0 : index
    %35 = vector.load %arg9[%c0_21, %c0_22] : memref<8x1xf32, #tpu.memory_space<vmem>>, vector<8x1xf32>
    %cst_23 = arith.constant dense<0.000000e+00> : vector<8x512xf32>
    %36 = tpu.matmul %34, %21, %cst_23 {dimension_numbers = #tpu.dot_dimension_numbers<[1], [0], [0], [1], [0, 0, 1, 1], [], []>} : vector<8x32xf32>, vector<32x512xf32>, vector<8x512xf32> -> vector<8x512xf32>
    %37 = vector.broadcast %35 : vector<8x1xf32> to vector<8x512xf32>
    %38 = arith.addf %36, %37 : vector<8x512xf32>
    %39 = vector.extract_strided_slice %38 {offsets = [0, 0], sizes = [8, 256], strides = [1, 1]} : vector<8x512xf32> to vector<8x256xf32>
    %40 = vector.extract_strided_slice %38 {offsets = [0, 256], sizes = [8, 256], strides = [1, 1]} : vector<8x512xf32> to vector<8x256xf32>
    %41 = arith.subf %39, %40 : vector<8x256xf32>
    %42 = arith.mulf %41, %41 : vector<8x256xf32>
    %cst_24 = arith.constant dense<0.000000e+00> : vector<256xf32>
    %43 = vector.multi_reduction <add>, %42, %cst_24 [0] : vector<8x256xf32> to vector<256xf32>
    %44 = vector.shape_cast %43 : vector<256xf32> to vector<1x256xf32>
    %cst_25 = arith.constant 0.000000e+00 : f32
    %45 = vector.broadcast %cst_25 : f32 to vector<5x256xf32>
    %c0_26 = arith.constant 0 : index
    %c0_27 = arith.constant 0 : index
    %c0_28 = arith.constant 0 : index
    %46 = vector.load %arg10[%c0_26, %c0_27, %c0_28] : memref<1x8x256xf32, #tpu.memory_space<vmem>>, vector<1x8x256xf32>
    %47 = vector.shape_cast %46 : vector<1x8x256xf32> to vector<8x256xf32>
    %48 = tpu.concatenate %30, %33, %44, %45 in 0 : vector<1x256xf32>, vector<1x256xf32>, vector<1x256xf32>, vector<5x256xf32> -> vector<8x256xf32>
    %49 = arith.addf %47, %48 : vector<8x256xf32>
    %c0_29 = arith.constant 0 : index
    %c0_30 = arith.constant 0 : index
    %c0_31 = arith.constant 0 : index
    %50 = vector.load %arg10[%c0_29, %c0_30, %c0_31] : memref<1x8x256xf32, #tpu.memory_space<vmem>>, vector<1x8x256xf32>
    %51 = vector.shape_cast %50 : vector<1x8x256xf32> to vector<8x256xf32>
    %52 = vector.shape_cast %49 : vector<8x256xf32> to vector<1x8x256xf32>
    tpu.vector_store %arg10[%c0_29, %c0_30, %c0_31], %52 {strides = array<i32>} : memref<1x8x256xf32, #tpu.memory_space<vmem>>, vector<1x8x256xf32>,
    return
  }
  func.func @transform_0(%arg0: i32, %arg1: i32) -> (i32, i32, i32) {
    %c0_i32 = arith.constant 0 : i32
    %c0_i32_0 = arith.constant 0 : i32
    return %arg0, %c0_i32, %arg1 : i32, i32, i32
  }
  func.func @transform_1(%arg0: i32, %arg1: i32) -> (i32, i32, i32) {
    %c0_i32 = arith.constant 0 : i32
    %c0_i32_0 = arith.constant 0 : i32
    return %arg0, %c0_i32, %arg1 : i32, i32, i32
  }
  func.func @transform_2(%arg0: i32, %arg1: i32) -> (i32, i32) {
    %c0_i32 = arith.constant 0 : i32
    %c0_i32_0 = arith.constant 0 : i32
    %c0_i32_1 = arith.constant 0 : i32
    return %c0_i32, %c0_i32_0 : i32, i32
  }
  func.func @transform_3(%arg0: i32, %arg1: i32) -> (i32, i32) {
    %c0_i32 = arith.constant 0 : i32
    %c0_i32_0 = arith.constant 0 : i32
    %c0_i32_1 = arith.constant 0 : i32
    return %c0_i32, %c0_i32_0 : i32, i32
  }
  func.func @transform_4(%arg0: i32, %arg1: i32) -> (i32, i32) {
    %c0_i32 = arith.constant 0 : i32
    %c0_i32_0 = arith.constant 0 : i32
    %c0_i32_1 = arith.constant 0 : i32
    return %c0_i32, %c0_i32_0 : i32, i32
  }
  func.func @transform_5(%arg0: i32, %arg1: i32) -> (i32, i32) {
    %c0_i32 = arith.constant 0 : i32
    %c0_i32_0 = arith.constant 0 : i32
    %c0_i32_1 = arith.constant 0 : i32
    return %c0_i32, %c0_i32_0 : i32, i32
  }
  func.func @transform_6(%arg0: i32, %arg1: i32) -> (i32, i32) {
    %c0_i32 = arith.constant 0 : i32
    %c0_i32_0 = arith.constant 0 : i32
    %c0_i32_1 = arith.constant 0 : i32
    return %c0_i32, %c0_i32_0 : i32, i32
  }
  func.func @transform_7(%arg0: i32, %arg1: i32) -> (i32, i32) {
    %c0_i32 = arith.constant 0 : i32
    %c0_i32_0 = arith.constant 0 : i32
    %c0_i32_1 = arith.constant 0 : i32
    return %c0_i32, %c0_i32_0 : i32, i32
  }
  func.func @transform_8(%arg0: i32, %arg1: i32) -> (i32, i32, i32) {
    %c0_i32 = arith.constant 0 : i32
    %c0_i32_0 = arith.constant 0 : i32
    %c0_i32_1 = arith.constant 0 : i32
    return %arg0, %c0_i32, %c0_i32_0 : i32, i32, i32
  }
}

</mosaic_0001>

<llo_original>
// kernel: tpu_custom_call.1
$region0: #{tpu_custom_call.1}
  #allocation0 [shape = 'u32[]', space=smem, size = 0x4, offset = 0x4, fixed_abs, tag = 'smem constant byte address 0x4 - core index']
  #allocation1 [shape = 'u32[144,128]{1,0:T(1,128)}', space=vmem, size = 0x12000, scoped, tag = 'internal scratch']
  %s0 = inlined_call_operand.vmem [shape: f32[2,4,256], index: 0, kind: input, shape index: {}]
  %s1 = inlined_call_operand.vmem [shape: f32[2,4,256], index: 1, kind: input, shape index: {}]
  %s2 = inlined_call_operand.vmem [shape: f32[32,4], index: 2, kind: input, shape index: {}]
  %s3 = inlined_call_operand.vmem [shape: f32[32,1], index: 3, kind: input, shape index: {}]
  %s4 = inlined_call_operand.vmem [shape: f32[32,32], index: 4, kind: input, shape index: {}]
  %s5 = inlined_call_operand.vmem [shape: f32[32,1], index: 5, kind: input, shape index: {}]
  %s6 = inlined_call_operand.vmem [shape: f32[8,32], index: 6, kind: input, shape index: {}]
  %s7 = inlined_call_operand.vmem [shape: f32[8,1], index: 7, kind: input, shape index: {}]
  %s8 = inlined_call_operand.hbm [shape: f32[2,8,256], index: 8, kind: output, shape index: {}]
  %s9 = sld [smem:[#allocation0]]
  $region69: #{tpu_custom_call.1} parent=0
    _
  %s11 = ssub.s32 1, %s9
  %s12 = scalar_select 0, %s11, %s9
  $region1: #{tpu_custom_call.1} parent=0
    #allocation2 [shape = 'u8[16384]{0}', space=vmem, size = 0x4000, scoped, tag = 'output window, operand 0']
    #allocation3 [shape = 's32[2]{0}', space=sflag, size = 0x8, scoped, tag = 'scoped memory for tpu_custom_call.1']
    %13 = vsyncpa [#allocation3], 0
    %s14 = scalar_lea.sflag [#allocation3], 1
    %15 = vsyncpa %s14, 0
    loop: start=0, step=1, limit=4
    $region2: #{tpu_custom_call.1} parent=1 // loop_pre_header
      _
    $region3: #{tpu_custom_call.1} parent=1 // loop_header
      %s17 = sphi 0, %s21
      %p18 = scmp.ge.s32.totalorder %s17, 4
      %s24 = sphi 0, %s36
      %s25 = sphi 0, %s32
      %s26 = sphi 0, %s24
      %s27 = sphi 0, %s25
      %s28 = sphi 0, %s26
      %s29 = sphi 0, %s27
      %s41 = sphi 0, %s43
      %s44 = sphi 0, %s41
      %s45 = sphi 0, %s44
      %s61 = sphi 0, %s45
      %s69 = sphi 0, %s71
      %s72 = sphi 0, %s69
      %s73 = sphi 0, %s72
      %s89 = sphi 0, %s73
      %s93 = sphi 0, %s93
      %s95 = sphi 0, %s93
      %s96 = sphi 0, %s95
      %s110 = sphi 0, %s96
      %s114 = sphi 0, %s114
      %s116 = sphi 0, %s114
      %s117 = sphi 0, %s116
      %s131 = sphi 0, %s117
      %s135 = sphi 0, %s135
      %s137 = sphi 0, %s135
      %s138 = sphi 0, %s137
      %s152 = sphi 0, %s138
      %s156 = sphi 0, %s156
      %s158 = sphi 0, %s156
      %s159 = sphi 0, %s158
      %s173 = sphi 0, %s159
      %s177 = sphi 0, %s177
      %s179 = sphi 0, %s177
      %s180 = sphi 0, %s179
      %s194 = sphi 0, %s180
      %s198 = sphi 0, %s198
      %s200 = sphi 0, %s198
      %s201 = sphi 0, %s200
      %s215 = sphi 0, %s201
      %s221 = sphi 0, %s223
      %s224 = sphi 0, %s221
      %s225 = sphi 0, %s224
      %s241 = sphi 0, %s225
    $region4: #{tpu_custom_call.1} parent=1 // loop_header_branch
      %20 = sbr.rel (%p18) target = $region8
    $region5: #{tpu_custom_call.1} parent=1 // loop_body
      %s22 = ssub.s32 %s17, 1
      %s23 = ssub.s32 %s17, 2
      %s30 = sadd.s32 1, %s25
      %p31 = scmp.ge.s32.totalorder %s30, 1
      %s32 = scalar_select %p31, 0, %s30
      %s33 = sadd.s32 1, %s24
      %s34 = scalar_select %p31, %s33, %s24
      %p35 = scmp.ge.s32.totalorder %s34, 2
      %s36 = scalar_select %p35, 0, %s34
      %s37 = ssub.s32 %s24, %s36
      %s38 = ssub.s32 %s25, %s32
      %s39 = sor.u32 %s37, %s38
      %p40 = scmp.eq.s32.totalorder %s39, 0
      %s42 = sadd.s32 %s41, 1
      %s43 = scalar_select %p40, %s41, %s42
      %p46 = pneg %p40
      %p47 = scmp.eq.s32.totalorder %s17, 1
      %p48 = por %p46, %p47
      %p49 = scmp.ne.s32.totalorder %s41, %s44
      %p50 = scmp.eq.s32.totalorder %s17, 0
      %p51 = por %p49, %p50
      %p52 = scmp.ne.s32.totalorder %s41, %s44
      %p53 = scmp.eq.s32.totalorder %s22, 1
      %p54 = por %p52, %p53
      %p55 = scmp.ne.s32.totalorder %s44, %s45
      %p56 = scmp.eq.s32.totalorder %s22, 0
      %p57 = por %p55, %p56
      %p58 = scmp.ne.s32.totalorder %s44, %s45
      %p59 = scmp.eq.s32.totalorder %s23, 1
      %p60 = por %p58, %p59
      %p62 = scmp.ne.s32.totalorder %s45, %s61
      %p63 = scmp.eq.s32.totalorder %s23, 0
      %p64 = por %p62, %p63
      %s65 = ssub.s32 %s24, %s36
      %s66 = ssub.s32 %s25, %s32
      %s67 = sor.u32 %s65, %s66
      %p68 = scmp.eq.s32.totalorder %s67, 0
      %s70 = sadd.s32 %s69, 1
      %s71 = scalar_select %p68, %s69, %s70
      %p74 = pneg %p68
      %p75 = scmp.eq.s32.totalorder %s17, 1
      %p76 = por %p74, %p75
      %p77 = scmp.ne.s32.totalorder %s69, %s72
      %p78 = scmp.eq.s32.totalorder %s17, 0
      %p79 = por %p77, %p78
      %p80 = scmp.ne.s32.totalorder %s69, %s72
      %p81 = scmp.eq.s32.totalorder %s22, 1
      %p82 = por %p80, %p81
      %p83 = scmp.ne.s32.totalorder %s72, %s73
      %p84 = scmp.eq.s32.totalorder %s22, 0
      %p85 = por %p83, %p84
      %p86 = scmp.ne.s32.totalorder %s72, %s73
      %p87 = scmp.eq.s32.totalorder %s23, 1
      %p88 = por %p86, %p87
      %p90 = scmp.ne.s32.totalorder %s73, %s89
      %p91 = scmp.eq.s32.totalorder %s23, 0
      %p92 = por %p90, %p91
      %s94 = sadd.s32 %s93, 1
      %p97 = scmp.eq.s32.totalorder %s17, 1
      %p98 = scmp.ne.s32.totalorder %s93, %s95
      %p99 = scmp.eq.s32.totalorder %s17, 0
      %p100 = por %p98, %p99
      %p101 = scmp.ne.s32.totalorder %s93, %s95
      %p102 = scmp.eq.s32.totalorder %s22, 1
      %p103 = por %p101, %p102
      %p104 = scmp.ne.s32.totalorder %s95, %s96
      %p105 = scmp.eq.s32.totalorder %s22, 0
      %p106 = por %p104, %p105
      %p107 = scmp.ne.s32.totalorder %s95, %s96
      %p108 = scmp.eq.s32.totalorder %s23, 1
      %p109 = por %p107, %p108
      %p111 = scmp.ne.s32.totalorder %s96, %s110
      %p112 = scmp.eq.s32.totalorder %s23, 0
      %p113 = por %p111, %p112
      %s115 = sadd.s32 %s114, 1
      %p118 = scmp.eq.s32.totalorder %s17, 1
      %p119 = scmp.ne.s32.totalorder %s114, %s116
      %p120 = scmp.eq.s32.totalorder %s17, 0
      %p121 = por %p119, %p120
      %p122 = scmp.ne.s32.totalorder %s114, %s116
      %p123 = scmp.eq.s32.totalorder %s22, 1
      %p124 = por %p122, %p123
      %p125 = scmp.ne.s32.totalorder %s116, %s117
      %p126 = scmp.eq.s32.totalorder %s22, 0
      %p127 = por %p125, %p126
      %p128 = scmp.ne.s32.totalorder %s116, %s117
      %p129 = scmp.eq.s32.totalorder %s23, 1
      %p130 = por %p128, %p129
      %p132 = scmp.ne.s32.totalorder %s117, %s131
      %p133 = scmp.eq.s32.totalorder %s23, 0
      %p134 = por %p132, %p133
      %s136 = sadd.s32 %s135, 1
      %p139 = scmp.eq.s32.totalorder %s17, 1
      %p140 = scmp.ne.s32.totalorder %s135, %s137
      %p141 = scmp.eq.s32.totalorder %s17, 0
      %p142 = por %p140, %p141
      %p143 = scmp.ne.s32.totalorder %s135, %s137
      %p144 = scmp.eq.s32.totalorder %s22, 1
      %p145 = por %p143, %p144
      %p146 = scmp.ne.s32.totalorder %s137, %s138
      %p147 = scmp.eq.s32.totalorder %s22, 0
      %p148 = por %p146, %p147
      %p149 = scmp.ne.s32.totalorder %s137, %s138
      %p150 = scmp.eq.s32.totalorder %s23, 1
      %p151 = por %p149, %p150
      %p153 = scmp.ne.s32.totalorder %s138, %s152
      %p154 = scmp.eq.s32.totalorder %s23, 0
      %p155 = por %p153, %p154
      %s157 = sadd.s32 %s156, 1
      %p160 = scmp.eq.s32.totalorder %s17, 1
      %p161 = scmp.ne.s32.totalorder %s156, %s158
      %p162 = scmp.eq.s32.totalorder %s17, 0
      %p163 = por %p161, %p162
      %p164 = scmp.ne.s32.totalorder %s156, %s158
      %p165 = scmp.eq.s32.totalorder %s22, 1
      %p166 = por %p164, %p165
      %p167 = scmp.ne.s32.totalorder %s158, %s159
      %p168 = scmp.eq.s32.totalorder %s22, 0
      %p169 = por %p167, %p168
      %p170 = scmp.ne.s32.totalorder %s158, %s159
      %p171 = scmp.eq.s32.totalorder %s23, 1
      %p172 = por %p170, %p171
      %p174 = scmp.ne.s32.totalorder %s159, %s173
      %p175 = scmp.eq.s32.totalorder %s23, 0
      %p176 = por %p174, %p175
      %s178 = sadd.s32 %s177, 1
      %p181 = scmp.eq.s32.totalorder %s17, 1
      %p182 = scmp.ne.s32.totalorder %s177, %s179
      %p183 = scmp.eq.s32.totalorder %s17, 0
      %p184 = por %p182, %p183
      %p185 = scmp.ne.s32.totalorder %s177, %s179
      %p186 = scmp.eq.s32.totalorder %s22, 1
      %p187 = por %p185, %p186
      %p188 = scmp.ne.s32.totalorder %s179, %s180
      %p189 = scmp.eq.s32.totalorder %s22, 0
      %p190 = por %p188, %p189
      %p191 = scmp.ne.s32.totalorder %s179, %s180
      %p192 = scmp.eq.s32.totalorder %s23, 1
      %p193 = por %p191, %p192
      %p195 = scmp.ne.s32.totalorder %s180, %s194
      %p196 = scmp.eq.s32.totalorder %s23, 0
      %p197 = por %p195, %p196
      %s199 = sadd.s32 %s198, 1
      %p202 = scmp.eq.s32.totalorder %s17, 1
      %p203 = scmp.ne.s32.totalorder %s198, %s200
      %p204 = scmp.eq.s32.totalorder %s17, 0
      %p205 = por %p203, %p204
      %p206 = scmp.ne.s32.totalorder %s198, %s200
      %p207 = scmp.eq.s32.totalorder %s22, 1
      %p208 = por %p206, %p207
      %p209 = scmp.ne.s32.totalorder %s200, %s201
      %p210 = scmp.eq.s32.totalorder %s22, 0
      %p211 = por %p209, %p210
      %p212 = scmp.ne.s32.totalorder %s200, %s201
      %p213 = scmp.eq.s32.totalorder %s23, 1
      %p214 = por %p212, %p213
      %p216 = scmp.ne.s32.totalorder %s201, %s215
      %p217 = scmp.eq.s32.totalorder %s23, 0
      %p218 = por %p216, %p217
      %s219 = ssub.s32 %s24, %s36
      %p220 = scmp.eq.s32.totalorder %s219, 0
      %s222 = sadd.s32 %s221, 1
      %s223 = scalar_select %p220, %s221, %s222
      %p226 = pneg %p220
      %p227 = scmp.eq.s32.totalorder %s17, 1
      %p228 = por %p226, %p227
      %p229 = scmp.ne.s32.totalorder %s221, %s224
      %p230 = scmp.eq.s32.totalorder %s17, 0
      %p231 = por %p229, %p230
      %p232 = scmp.ne.s32.totalorder %s221, %s224
      %p233 = scmp.eq.s32.totalorder %s22, 1
      %p234 = por %p232, %p233
      %p235 = scmp.ne.s32.totalorder %s224, %s225
      %p236 = scmp.eq.s32.totalorder %s22, 0
      %p237 = por %p235, %p236
      %p238 = scmp.ne.s32.totalorder %s224, %s225
      %p239 = scmp.eq.s32.totalorder %s23, 1
      %p240 = por %p238, %p239
      %p242 = scmp.ne.s32.totalorder %s225, %s241
      %p243 = scmp.eq.s32.totalorder %s23, 0
      %p244 = por %p242, %p243
      %p245 = scmp.le.s32.totalorder 1, %s17
      %p246 = scmp.lt.s32.totalorder %s17, 3
      %p247 = pnand %p245, %p246
      %p248 = pneg %p247
      // Predicated region
      $region9: #{tpu_custom_call.1} parent=5 // pred_check
        _
      $region10: #{tpu_custom_call.1} parent=5 // pred_check_branch
        %250 = sbr.rel (%p247) target = $region12
      $region11: #{tpu_custom_call.1} parent=5 // pred_region
        %s251 = ssub.s32 %s17, 1
        // Predicated region
        $region13: #{tpu_custom_call.1} parent=11 // pred_check
          %p252 = pneg %p106
        $region14: #{tpu_custom_call.1} parent=11 // pred_check_branch
          %254 = sbr.rel (%p252) target = $region16
        $region15: #{tpu_custom_call.1} parent=11 // pred_region
          _
        $region16: #{tpu_custom_call.1} parent=11 // pred_fallthru
          _
        // Predicated region
        $region17: #{tpu_custom_call.1} parent=11 // pred_check
          %p255 = pneg %p127
        $region18: #{tpu_custom_call.1} parent=11 // pred_check_branch
          %257 = sbr.rel (%p255) target = $region20
        $region19: #{tpu_custom_call.1} parent=11 // pred_region
          _
        $region20: #{tpu_custom_call.1} parent=11 // pred_fallthru
          _
        // Predicated region
        $region21: #{tpu_custom_call.1} parent=11 // pred_check
          %p258 = pneg %p148
        $region22: #{tpu_custom_call.1} parent=11 // pred_check_branch
          %260 = sbr.rel (%p258) target = $region24
        $region23: #{tpu_custom_call.1} parent=11 // pred_region
          _
        $region24: #{tpu_custom_call.1} parent=11 // pred_fallthru
          _
        // Predicated region
        $region25: #{tpu_custom_call.1} parent=11 // pred_check
          %p261 = pneg %p169
        $region26: #{tpu_custom_call.1} parent=11 // pred_check_branch
          %263 = sbr.rel (%p261) target = $region28
        $region27: #{tpu_custom_call.1} parent=11 // pred_region
          _
        $region28: #{tpu_custom_call.1} parent=11 // pred_fallthru
          _
        // Predicated region
        $region29: #{tpu_custom_call.1} parent=11 // pred_check
          %p264 = pneg %p190
        $region30: #{tpu_custom_call.1} parent=11 // pred_check_branch
          %266 = sbr.rel (%p264) target = $region32
        $region31: #{tpu_custom_call.1} parent=11 // pred_region
          _
        $region32: #{tpu_custom_call.1} parent=11 // pred_fallthru
          _
        // Predicated region
        $region33: #{tpu_custom_call.1} parent=11 // pred_check
          %p267 = pneg %p211
        $region34: #{tpu_custom_call.1} parent=11 // pred_check_branch
          %269 = sbr.rel (%p267) target = $region36
        $region35: #{tpu_custom_call.1} parent=11 // pred_region
          _
        $region36: #{tpu_custom_call.1} parent=11 // pred_fallthru
          _
      $region12: #{tpu_custom_call.1} parent=5 // pred_fallthru
        _
      %p270 = scmp.lt.s32.totalorder %s17, 2
      // Predicated region
      $region37: #{tpu_custom_call.1} parent=5 // pred_check
        %p271 = pneg %p270
      $region38: #{tpu_custom_call.1} parent=5 // pred_check_branch
        %273 = sbr.rel (%p271) target = $region40
      $region39: #{tpu_custom_call.1} parent=5 // pred_region
        // Predicated region
        $region41: #{tpu_custom_call.1} parent=39 // pred_check
          %p274 = pneg %p51
        $region42: #{tpu_custom_call.1} parent=39 // pred_check_branch
          %276 = sbr.rel (%p274) target = $region44
        $region43: #{tpu_custom_call.1} parent=39 // pred_region
          %s277 = smul.u32 2, %s25
          %p278 = scmp.lt.s32.totalorder %s24, 1
          %s279 = scalar_select %p278, %s24, 1
          %p280 = scmp.lt.s32.totalorder %s277, 1
          %s281 = scalar_select %p280, %s277, 1
          %s282 = smul.addr %s279, 2
          %s283 = sadd.s32 %s281, %s282
          %s284 = smul.addr %s283, 4
          %s285 = scalar_lea.vmem %s0, %s284
          %s286 = smul.u32 2, %s25
        $region44: #{tpu_custom_call.1} parent=39 // pred_fallthru
          _
        // Predicated region
        $region45: #{tpu_custom_call.1} parent=39 // pred_check
          %p287 = pneg %p79
        $region46: #{tpu_custom_call.1} parent=39 // pred_check_branch
          %289 = sbr.rel (%p287) target = $region48
        $region47: #{tpu_custom_call.1} parent=39 // pred_region
          %s290 = smul.u32 2, %s25
          %p291 = scmp.lt.s32.totalorder %s24, 1
          %s292 = scalar_select %p291, %s24, 1
          %p293 = scmp.lt.s32.totalorder %s290, 1
          %s294 = scalar_select %p293, %s290, 1
          %s295 = smul.addr %s292, 2
          %s296 = sadd.s32 %s294, %s295
          %s297 = smul.addr %s296, 4
          %s298 = scalar_lea.vmem %s1, %s297
          %s299 = smul.u32 2, %s25
        $region48: #{tpu_custom_call.1} parent=39 // pred_fallthru
          _
      $region40: #{tpu_custom_call.1} parent=5 // pred_fallthru
        _
      %p300 = scmp.le.s32.totalorder 1, %s17
      %p301 = scmp.lt.s32.totalorder %s17, 3
      %p302 = pnand %p300, %p301
      %p303 = pneg %p302
      // Predicated region
      $region49: #{tpu_custom_call.1} parent=5 // pred_check
        _
      $region50: #{tpu_custom_call.1} parent=5 // pred_check_branch
        %305 = sbr.rel (%p302) target = $region52
      $region51: #{tpu_custom_call.1} parent=5 // pred_region
        %s306 = ssub.s32 %s17, 1
        %s307 = smul.u32 2, %s27
        %p308 = scmp.lt.s32.totalorder %s26, 1
        %s309 = scalar_select %p308, %s26, 1
        %p310 = scmp.lt.s32.totalorder %s307, 1
        %s311 = scalar_select %p310, %s307, 1
        %s312 = smul.addr %s309, 2
        %s313 = sadd.s32 %s311, %s312
        %s314 = smul.addr %s313, 4
        %s315 = scalar_lea.vmem %s0, %s314
        %p316 = pneg %p57
        %p317 = pneg %p54
        %s318 = smul.u32 2, %s27
        %p319 = scmp.lt.s32.totalorder %s26, 1
        %s320 = scalar_select %p319, %s26, 1
        %p321 = scmp.lt.s32.totalorder %s318, 1
        %s322 = scalar_select %p321, %s318, 1
        %s323 = smul.addr %s320, 2
        %s324 = sadd.s32 %s322, %s323
        %s325 = smul.addr %s324, 4
        %s326 = scalar_lea.vmem %s1, %s325
        %p327 = pneg %p85
        %p328 = pneg %p82
        %p329 = pneg %p106
        %p330 = pneg %p103
        %p331 = pneg %p127
        %p332 = pneg %p124
        %p333 = pneg %p148
        %p334 = pneg %p145
        %p335 = pneg %p169
        %p336 = pneg %p166
        %p337 = pneg %p190
        %p338 = pneg %p187
        %p339 = pneg %p211
        %p340 = pneg %p208
        %p341 = pneg %p237
        %p342 = pneg %p234
        %s343 = sand.u32 %s224, 1
        %s344 = scalar_lea.sflag [#allocation3], %s343
        %s345 = sand.u32 %s224, 1
        %s346 = smul.addr %s345, 16
        %s347 = scalar_lea.vmem [#allocation2], %s346
        %s348 = smul.u32 2, %s27
        %p349 = scmp.lt.s32.totalorder %s26, 1
        %s350 = scalar_select %p349, %s26, 1
        %p351 = scmp.lt.s32.totalorder %s348, 1
        %s352 = scalar_select %p351, %s348, 1
        %s353 = smul.addr %s350, 2
        %s354 = sadd.s32 %s352, %s353
        %s355 = smul.addr %s354, 4
        %s356 = scalar_lea.vmem %s0, %s355
        %s357 = smul.u32 2, %s27
        %s358 = smul.u32 2, %s27
        %p359 = scmp.lt.s32.totalorder %s26, 1
        %s360 = scalar_select %p359, %s26, 1
        %p361 = scmp.lt.s32.totalorder %s358, 1
        %s362 = scalar_select %p361, %s358, 1
        %s363 = smul.addr %s360, 2
        %s364 = sadd.s32 %s362, %s363
        %s365 = smul.addr %s364, 4
        %s366 = scalar_lea.vmem %s1, %s365
        %s367 = smul.u32 2, %s27
        %p368 = scmp.eq.s32.totalorder %s27, 0
        // Predicated region
        $region53: #{tpu_custom_call.1} parent=51 // pred_check
          %p369 = pneg %p368
        $region54: #{tpu_custom_call.1} parent=51 // pred_check_branch
          %371 = sbr.rel (%p369) target = $region56
        $region55: #{tpu_custom_call.1} parent=51 // pred_region
          %372 = vst [vmem:[%s347] sm:$0xff] 0.0
          %373 = vst [vmem:[%s347 + $0x8] sm:$0xff] 0.0
        $region56: #{tpu_custom_call.1} parent=51 // pred_fallthru
          _
        %v374 = vld [vmem:[%s356] sm:$0xff]
        %v375 = vld [vmem:[%s366] sm:$0xff]
        %v377 = vcombine.high %v374, %v374
        %v379 = vcombine.high %v375, %v375
        %v380 = vld [vmem:[%s2] sm:$0xff]
        %v381 = vld [vmem:[%s2 + $0x8] sm:$0xff]
        %v382 = vld [vmem:[%s2 + $0x10] sm:$0xff]
        %v383 = vld [vmem:[%s2 + $0x18] sm:$0xff]
        %v384 = vld [vmem:[%s3] sm:$0xff]
        %v385 = vld [vmem:[%s3 + $0x8] sm:$0xff]
        %v386 = vld [vmem:[%s3 + $0x10] sm:$0xff]
        %v387 = vld [vmem:[%s3 + $0x18] sm:$0xff]
        %v388 = vld [vmem:[%s4] sm:$0xff]
        %v389 = vld [vmem:[%s4 + $0x8] sm:$0xff]
        %v390 = vld [vmem:[%s4 + $0x10] sm:$0xff]
        %v391 = vld [vmem:[%s4 + $0x18] sm:$0xff]
        %v392 = vld [vmem:[%s5] sm:$0xff]
        %v393 = vld [vmem:[%s5 + $0x8] sm:$0xff]
        %v394 = vld [vmem:[%s5 + $0x10] sm:$0xff]
        %v395 = vld [vmem:[%s5 + $0x18] sm:$0xff]
        %397 = vset.pattern.permute.xlu0 0
        %398 = vperm.xlu0 %397, %v384
        %v399 = vpop.permute.xlu0 %398
        %402 = vset.pattern.permute.xlu0 0
        %403 = vperm.xlu0 %402, %v385
        %v404 = vpop.permute.xlu0 %403
        %407 = vset.pattern.permute.xlu0 0
        %408 = vperm.xlu0 %407, %v386
        %v409 = vpop.permute.xlu0 %408
        %412 = vset.pattern.permute.xlu0 0
        %413 = vperm.xlu0 %412, %v387
        %v414 = vpop.permute.xlu0 %413
        %vm416 = vcmask 31744
        %v418 = vsel %vm416, %v380, 0
        %v421 = vsel %vm416, %v381, 0
        %v424 = vsel %vm416, %v382, 0
        %v427 = vsel %vm416, %v383, 0
        %vm429 = vcmask 1043456
        %v430 = vsel %vm429, %v374, 0
        %v432 = vsel %vm429, %v377, 0
        %v434 = vsel %vm429, %v375, 0
        %v436 = vsel %vm429, %v379, 0
        %438 = vmatprep.subr.mxu0 %v432
        %439 = vmatpush1.msra.mxu0 %v430
        %440 = vmatprep.subr.mxu0 0.0
        %441 = vmatpush1.msra.mxu0 0.0
        %442 = vmatprep.subr.mxu0 0.0
        %443 = vmatpush1.msra.mxu0 0.0
        %444 = vmatprep.subr.mxu0 0.0
        %445 = vmatpush1.msra.mxu0 0.0
        %446 = vmatprep.subr.mxu0 0.0
        %447 = vmatpush1.msra.mxu0 0.0
        %448 = vmatprep.subr.mxu0 0.0
        %449 = vmatpush1.msra.mxu0 0.0
        %450 = vmatprep.subr.mxu0 0.0
        %451 = vmatpush1.msra.mxu0 0.0
        %452 = vmatprep.subr.mxu0 0.0
        %453 = vmatpush1.msra.mxu0 0.0
        %454 = vmatprep.subr.mxu0 0.0
        %455 = vmatpush1.msra.mxu0 0.0
        %456 = vmatprep.subr.mxu0 0.0
        %457 = vmatpush1.msra.mxu0 0.0
        %458 = vmatprep.subr.mxu0 0.0
        %459 = vmatpush1.msra.mxu0 0.0
        %460 = vmatprep.subr.mxu0 0.0
        %461 = vmatpush1.msra.mxu0 0.0
        %462 = vmatprep.subr.mxu0 0.0
        %463 = vmatpush1.msra.mxu0 0.0
        %464 = vmatprep.subr.mxu0 0.0
        %465 = vmatpush1.msra.mxu0 0.0
        %466 = vmatprep.subr.mxu0 0.0
        %467 = vmatpush1.msra.mxu0 0.0
        %468 = vmatprep.subr.mxu0 0.0
        %469 = vmatpush1.msra.mxu0 0.0
        %470 = vmatprep.subr.mxu0 0.0
        %471 = vmatpush1.msra.mxu0 0.0
        %472 = vmatprep.subr.mxu0 0.0
        %473 = vmatpush1.msra.mxu0 0.0
        %474 = vmatprep.subr.mxu0 0.0
        %475 = vmatpush1.msra.mxu0 0.0
        %476 = vmatprep.subr.mxu0 0.0
        %477 = vmatpush1.msra.mxu0 0.0
        %478 = vmatprep.subr.mxu0 0.0
        %479 = vmatpush1.msra.mxu0 0.0
        %480 = vmatprep.subr.mxu0 0.0
        %481 = vmatpush1.msra.mxu0 0.0
        %482 = vmatprep.subr.mxu0 0.0
        %483 = vmatpush1.msra.mxu0 0.0
        %484 = vmatprep.subr.mxu0 0.0
        %485 = vmatpush1.msra.mxu0 0.0
        %486 = vmatprep.subr.mxu0 0.0
        %487 = vmatpush1.msra.mxu0 0.0
        %488 = vmatprep.subr.mxu0 0.0
        %489 = vmatpush1.msra.mxu0 0.0
        %490 = vmatprep.subr.mxu0 0.0
        %491 = vmatpush1.msra.mxu0 0.0
        %492 = vmatprep.subr.mxu0 0.0
        %493 = vmatpush1.msra.mxu0 0.0
        %494 = vmatprep.subr.mxu0 0.0
        %495 = vmatpush1.msra.mxu0 0.0
        %496 = vmatprep.subr.mxu0 0.0
        %497 = vmatpush1.msra.mxu0 0.0
        %498 = vmatprep.subr.mxu0 0.0
        %499 = vmatpush1.msra.mxu0 0.0
        %500 = vmatprep.subr.mxu0 0.0
        %501 = vmatpush1.msra.mxu0 0.0
        %502 = vmatprep.mubr.f32.mxu0 0.0
        %503 = vmatmul.mubr.f32.gmra.mrb[0].mxu0 %v418
        %v504 = vpop.f32.mrb[0].mxu0
        %v505 = vadd.f32 %v399, %v504
        %v506 = vpop.f32.mrb[0].mxu0
        %v507 = vadd.f32 %v399, %v506
        %508 = vmatprep.mubr.f32.mxu0 0.0
        %509 = vmatmul.mubr.f32.gmra.mrb[0].mxu0 %v421
        %v510 = vpop.f32.mrb[0].mxu0
        %v511 = vadd.f32 %v404, %v510
        %v512 = vpop.f32.mrb[0].mxu0
        %v513 = vadd.f32 %v404, %v512
        %514 = vmatprep.mubr.f32.mxu0 0.0
        %515 = vmatmul.mubr.f32.gmra.mrb[0].mxu0 %v424
        %v516 = vpop.f32.mrb[0].mxu0
        %v517 = vadd.f32 %v409, %v516
        %v518 = vpop.f32.mrb[0].mxu0
        %v519 = vadd.f32 %v409, %v518
        %520 = vmatprep.mubr.f32.mxu0 0.0
        %521 = vmatmul.mubr.f32.gmra.mrb[0].mxu0 %v427
        %v522 = vpop.f32.mrb[0].mxu0
        %v523 = vadd.f32 %v414, %v522
        %v524 = vpop.f32.mrb[0].mxu0
        %v525 = vadd.f32 %v414, %v524
        %526 = vdwg.mxu0
        %527 = vmatprep.subr.mxu0 %v436
        %528 = vmatpush1.msra.mxu0 %v434
        %529 = vmatprep.subr.mxu0 0.0
        %530 = vmatpush1.msra.mxu0 0.0
        %531 = vmatprep.subr.mxu0 0.0
        %532 = vmatpush1.msra.mxu0 0.0
        %533 = vmatprep.subr.mxu0 0.0
        %534 = vmatpush1.msra.mxu0 0.0
        %535 = vmatprep.subr.mxu0 0.0
        %536 = vmatpush1.msra.mxu0 0.0
        %537 = vmatprep.subr.mxu0 0.0
        %538 = vmatpush1.msra.mxu0 0.0
        %539 = vmatprep.subr.mxu0 0.0
        %540 = vmatpush1.msra.mxu0 0.0
        %541 = vmatprep.subr.mxu0 0.0
        %542 = vmatpush1.msra.mxu0 0.0
        %543 = vmatprep.subr.mxu0 0.0
        %544 = vmatpush1.msra.mxu0 0.0
        %545 = vmatprep.subr.mxu0 0.0
        %546 = vmatpush1.msra.mxu0 0.0
        %547 = vmatprep.subr.mxu0 0.0
        %548 = vmatpush1.msra.mxu0 0.0
        %549 = vmatprep.subr.mxu0 0.0
        %550 = vmatpush1.msra.mxu0 0.0
        %551 = vmatprep.subr.mxu0 0.0
        %552 = vmatpush1.msra.mxu0 0.0
        %553 = vmatprep.subr.mxu0 0.0
        %554 = vmatpush1.msra.mxu0 0.0
        %555 = vmatprep.subr.mxu0 0.0
        %556 = vmatpush1.msra.mxu0 0.0
        %557 = vmatprep.subr.mxu0 0.0
        %558 = vmatpush1.msra.mxu0 0.0
        %559 = vmatprep.subr.mxu0 0.0
        %560 = vmatpush1.msra.mxu0 0.0
        %561 = vmatprep.subr.mxu0 0.0
        %562 = vmatpush1.msra.mxu0 0.0
        %563 = vmatprep.subr.mxu0 0.0
        %564 = vmatpush1.msra.mxu0 0.0
        %565 = vmatprep.subr.mxu0 0.0
        %566 = vmatpush1.msra.mxu0 0.0
        %567 = vmatprep.subr.mxu0 0.0
        %568 = vmatpush1.msra.mxu0 0.0
        %569 = vmatprep.subr.mxu0 0.0
        %570 = vmatpush1.msra.mxu0 0.0
        %571 = vmatprep.subr.mxu0 0.0
        %572 = vmatpush1.msra.mxu0 0.0
        %573 = vmatprep.subr.mxu0 0.0
        %574 = vmatpush1.msra.mxu0 0.0
        %575 = vmatprep.subr.mxu0 0.0
        %576 = vmatpush1.msra.mxu0 0.0
        %577 = vmatprep.subr.mxu0 0.0
        %578 = vmatpush1.msra.mxu0 0.0
        %579 = vmatprep.subr.mxu0 0.0
        %580 = vmatpush1.msra.mxu0 0.0
        %581 = vmatprep.subr.mxu0 0.0
        %582 = vmatpush1.msra.mxu0 0.0
        %583 = vmatprep.subr.mxu0 0.0
        %584 = vmatpush1.msra.mxu0 0.0
        %585 = vmatprep.subr.mxu0 0.0
        %586 = vmatpush1.msra.mxu0 0.0
        %587 = vmatprep.subr.mxu0 0.0
        %588 = vmatpush1.msra.mxu0 0.0
        %589 = vmatprep.subr.mxu0 0.0
        %590 = vmatpush1.msra.mxu0 0.0
        %591 = vmatprep.mubr.f32.mxu0 0.0
        %592 = vmatmul.mubr.f32.gmra.mrb[0].mxu0 %v418
        %v593 = vpop.f32.mrb[0].mxu0
        %v594 = vadd.f32 %v399, %v593
        %v595 = vpop.f32.mrb[0].mxu0
        %v596 = vadd.f32 %v399, %v595
        %597 = vmatprep.mubr.f32.mxu0 0.0
        %598 = vmatmul.mubr.f32.gmra.mrb[0].mxu0 %v421
        %v599 = vpop.f32.mrb[0].mxu0
        %v600 = vadd.f32 %v404, %v599
        %v601 = vpop.f32.mrb[0].mxu0
        %v602 = vadd.f32 %v404, %v601
        %603 = vmatprep.mubr.f32.mxu0 0.0
        %604 = vmatmul.mubr.f32.gmra.mrb[0].mxu0 %v424
        %v605 = vpop.f32.mrb[0].mxu0
        %v606 = vadd.f32 %v409, %v605
        %v607 = vpop.f32.mrb[0].mxu0
        %v608 = vadd.f32 %v409, %v607
        %609 = vmatprep.mubr.f32.mxu0 0.0
        %610 = vmatmul.mubr.f32.gmra.mrb[0].mxu0 %v427
        %v611 = vpop.f32.mrb[0].mxu0
        %v612 = vadd.f32 %v414, %v611
        %v613 = vpop.f32.mrb[0].mxu0
        %v614 = vadd.f32 %v414, %v613
        %615 = vdwg.mxu0
        %v616 = vmax.f32 %v505, 0.0
        %v617 = vmax.f32 %v507, 0.0
        %v618 = vmax.f32 %v594, 0.0
        %v619 = vmax.f32 %v596, 0.0
        %v620 = vmax.f32 %v511, 0.0
        %v621 = vmax.f32 %v513, 0.0
        %v622 = vmax.f32 %v600, 0.0
        %v623 = vmax.f32 %v602, 0.0
        %v624 = vmax.f32 %v517, 0.0
        %v625 = vmax.f32 %v519, 0.0
        %v626 = vmax.f32 %v606, 0.0
        %v627 = vmax.f32 %v608, 0.0
        %v628 = vmax.f32 %v523, 0.0
        %v629 = vmax.f32 %v525, 0.0
        %v630 = vmax.f32 %v612, 0.0
        %v631 = vmax.f32 %v614, 0.0
        %633 = vset.pattern.permute.xlu0 0
        %634 = vperm.xlu0 %633, %v392
        %v635 = vpop.permute.xlu0 %634
        %638 = vset.pattern.permute.xlu0 0
        %639 = vperm.xlu0 %638, %v393
        %v640 = vpop.permute.xlu0 %639
        %643 = vset.pattern.permute.xlu0 0
        %644 = vperm.xlu0 %643, %v394
        %v645 = vpop.permute.xlu0 %644
        %648 = vset.pattern.permute.xlu0 0
        %649 = vperm.xlu0 %648, %v395
        %v650 = vpop.permute.xlu0 %649
        %vm652 = vcmask 261120
        %v654 = vsel %vm652, %v388, 0
        %v657 = vsel %vm652, %v389, 0
        %v660 = vsel %vm652, %v390, 0
        %v663 = vsel %vm652, %v391, 0
        %665 = vmatprep.subr.mxu0 %v617
        %666 = vmatpush1.msra.mxu0 %v616
        %667 = vmatprep.subr.mxu0 %v621
        %668 = vmatpush1.msra.mxu0 %v620
        %669 = vmatprep.subr.mxu0 %v625
        %670 = vmatpush1.msra.mxu0 %v624
        %671 = vmatprep.subr.mxu0 %v629
        %672 = vmatpush1.msra.mxu0 %v628
        %673 = vmatprep.subr.mxu0 0.0
        %674 = vmatpush1.msra.mxu0 0.0
        %675 = vmatprep.subr.mxu0 0.0
        %676 = vmatpush1.msra.mxu0 0.0
        %677 = vmatprep.subr.mxu0 0.0
        %678 = vmatpush1.msra.mxu0 0.0
        %679 = vmatprep.subr.mxu0 0.0
        %680 = vmatpush1.msra.mxu0 0.0
        %681 = vmatprep.subr.mxu0 0.0
        %682 = vmatpush1.msra.mxu0 0.0
        %683 = vmatprep.subr.mxu0 0.0
        %684 = vmatpush1.msra.mxu0 0.0
        %685 = vmatprep.subr.mxu0 0.0
        %686 = vmatpush1.msra.mxu0 0.0
        %687 = vmatprep.subr.mxu0 0.0
        %688 = vmatpush1.msra.mxu0 0.0
        %689 = vmatprep.subr.mxu0 0.0
        %690 = vmatpush1.msra.mxu0 0.0
        %691 = vmatprep.subr.mxu0 0.0
        %692 = vmatpush1.msra.mxu0 0.0
        %693 = vmatprep.subr.mxu0 0.0
        %694 = vmatpush1.msra.mxu0 0.0
        %695 = vmatprep.subr.mxu0 0.0
        %696 = vmatpush1.msra.mxu0 0.0
        %697 = vmatprep.subr.mxu0 0.0
        %698 = vmatpush1.msra.mxu0 0.0
        %699 = vmatprep.subr.mxu0 0.0
        %700 = vmatpush1.msra.mxu0 0.0
        %701 = vmatprep.subr.mxu0 0.0
        %702 = vmatpush1.msra.mxu0 0.0
        %703 = vmatprep.subr.mxu0 0.0
        %704 = vmatpush1.msra.mxu0 0.0
        %705 = vmatprep.subr.mxu0 0.0
        %706 = vmatpush1.msra.mxu0 0.0
        %707 = vmatprep.subr.mxu0 0.0
        %708 = vmatpush1.msra.mxu0 0.0
        %709 = vmatprep.subr.mxu0 0.0
        %710 = vmatpush1.msra.mxu0 0.0
        %711 = vmatprep.subr.mxu0 0.0
        %712 = vmatpush1.msra.mxu0 0.0
        %713 = vmatprep.subr.mxu0 0.0
        %714 = vmatpush1.msra.mxu0 0.0
        %715 = vmatprep.subr.mxu0 0.0
        %716 = vmatpush1.msra.mxu0 0.0
        %717 = vmatprep.subr.mxu0 0.0
        %718 = vmatpush1.msra.mxu0 0.0
        %719 = vmatprep.subr.mxu0 0.0
        %720 = vmatpush1.msra.mxu0 0.0
        %721 = vmatprep.subr.mxu0 0.0
        %722 = vmatpush1.msra.mxu0 0.0
        %723 = vmatprep.subr.mxu0 0.0
        %724 = vmatpush1.msra.mxu0 0.0
        %725 = vmatprep.subr.mxu0 0.0
        %726 = vmatpush1.msra.mxu0 0.0
        %727 = vmatprep.subr.mxu0 0.0
        %728 = vmatpush1.msra.mxu0 0.0
        %729 = vmatprep.mubr.f32.mxu0 0.0
        %730 = vmatmul.mubr.f32.gmra.mrb[0].mxu0 %v654
        %v731 = vpop.f32.mrb[0].mxu0
        %v732 = vadd.f32 %v635, %v731
        %v733 = vpop.f32.mrb[0].mxu0
        %v734 = vadd.f32 %v635, %v733
        %735 = vmatprep.mubr.f32.mxu0 0.0
        %736 = vmatmul.mubr.f32.gmra.mrb[0].mxu0 %v657
        %v737 = vpop.f32.mrb[0].mxu0
        %v738 = vadd.f32 %v640, %v737
        %v739 = vpop.f32.mrb[0].mxu0
        %v740 = vadd.f32 %v640, %v739
        %741 = vmatprep.mubr.f32.mxu0 0.0
        %742 = vmatmul.mubr.f32.gmra.mrb[0].mxu0 %v660
        %v743 = vpop.f32.mrb[0].mxu0
        %v744 = vadd.f32 %v645, %v743
        %v745 = vpop.f32.mrb[0].mxu0
        %v746 = vadd.f32 %v645, %v745
        %747 = vmatprep.mubr.f32.mxu0 0.0
        %748 = vmatmul.mubr.f32.gmra.mrb[0].mxu0 %v663
        %v749 = vpop.f32.mrb[0].mxu0
        %v750 = vadd.f32 %v650, %v749
        %v751 = vpop.f32.mrb[0].mxu0
        %v752 = vadd.f32 %v650, %v751
        %753 = vdwg.mxu0
        %754 = vmatprep.subr.mxu0 %v619
        %755 = vmatpush1.msra.mxu0 %v618
        %756 = vmatprep.subr.mxu0 %v623
        %757 = vmatpush1.msra.mxu0 %v622
        %758 = vmatprep.subr.mxu0 %v627
        %759 = vmatpush1.msra.mxu0 %v626
        %760 = vmatprep.subr.mxu0 %v631
        %761 = vmatpush1.msra.mxu0 %v630
        %762 = vmatprep.subr.mxu0 0.0
        %763 = vmatpush1.msra.mxu0 0.0
        %764 = vmatprep.subr.mxu0 0.0
        %765 = vmatpush1.msra.mxu0 0.0
        %766 = vmatprep.subr.mxu0 0.0
        %767 = vmatpush1.msra.mxu0 0.0
        %768 = vmatprep.subr.mxu0 0.0
        %769 = vmatpush1.msra.mxu0 0.0
        %770 = vmatprep.subr.mxu0 0.0
        %771 = vmatpush1.msra.mxu0 0.0
        %772 = vmatprep.subr.mxu0 0.0
        %773 = vmatpush1.msra.mxu0 0.0
        %774 = vmatprep.subr.mxu0 0.0
        %775 = vmatpush1.msra.mxu0 0.0
        %776 = vmatprep.subr.mxu0 0.0
        %777 = vmatpush1.msra.mxu0 0.0
        %778 = vmatprep.subr.mxu0 0.0
        %779 = vmatpush1.msra.mxu0 0.0
        %780 = vmatprep.subr.mxu0 0.0
        %781 = vmatpush1.msra.mxu0 0.0
        %782 = vmatprep.subr.mxu0 0.0
        %783 = vmatpush1.msra.mxu0 0.0
        %784 = vmatprep.subr.mxu0 0.0
        %785 = vmatpush1.msra.mxu0 0.0
        %786 = vmatprep.subr.mxu0 0.0
        %787 = vmatpush1.msra.mxu0 0.0
        %788 = vmatprep.subr.mxu0 0.0
        %789 = vmatpush1.msra.mxu0 0.0
        %790 = vmatprep.subr.mxu0 0.0
        %791 = vmatpush1.msra.mxu0 0.0
        %792 = vmatprep.subr.mxu0 0.0
        %793 = vmatpush1.msra.mxu0 0.0
        %794 = vmatprep.subr.mxu0 0.0
        %795 = vmatpush1.msra.mxu0 0.0
        %796 = vmatprep.subr.mxu0 0.0
        %797 = vmatpush1.msra.mxu0 0.0
        %798 = vmatprep.subr.mxu0 0.0
        %799 = vmatpush1.msra.mxu0 0.0
        %800 = vmatprep.subr.mxu0 0.0
        %801 = vmatpush1.msra.mxu0 0.0
        %802 = vmatprep.subr.mxu0 0.0
        %803 = vmatpush1.msra.mxu0 0.0
        %804 = vmatprep.subr.mxu0 0.0
        %805 = vmatpush1.msra.mxu0 0.0
        %806 = vmatprep.subr.mxu0 0.0
        %807 = vmatpush1.msra.mxu0 0.0
        %808 = vmatprep.subr.mxu0 0.0
        %809 = vmatpush1.msra.mxu0 0.0
        %810 = vmatprep.subr.mxu0 0.0
        %811 = vmatpush1.msra.mxu0 0.0
        %812 = vmatprep.subr.mxu0 0.0
        %813 = vmatpush1.msra.mxu0 0.0
        %814 = vmatprep.subr.mxu0 0.0
        %815 = vmatpush1.msra.mxu0 0.0
        %816 = vmatprep.subr.mxu0 0.0
        %817 = vmatpush1.msra.mxu0 0.0
        %818 = vmatprep.mubr.f32.mxu0 0.0
        %819 = vmatmul.mubr.f32.gmra.mrb[0].mxu0 %v654
        %v820 = vpop.f32.mrb[0].mxu0
        %v821 = vadd.f32 %v635, %v820
        %v822 = vpop.f32.mrb[0].mxu0
        %v823 = vadd.f32 %v635, %v822
        %824 = vmatprep.mubr.f32.mxu0 0.0
        %825 = vmatmul.mubr.f32.gmra.mrb[0].mxu0 %v657
        %v826 = vpop.f32.mrb[0].mxu0
        %v827 = vadd.f32 %v640, %v826
        %v828 = vpop.f32.mrb[0].mxu0
        %v829 = vadd.f32 %v640, %v828
        %830 = vmatprep.mubr.f32.mxu0 0.0
        %831 = vmatmul.mubr.f32.gmra.mrb[0].mxu0 %v660
        %v832 = vpop.f32.mrb[0].mxu0
        %v833 = vadd.f32 %v645, %v832
        %v834 = vpop.f32.mrb[0].mxu0
        %v835 = vadd.f32 %v645, %v834
        %836 = vmatprep.mubr.f32.mxu0 0.0
        %837 = vmatmul.mubr.f32.gmra.mrb[0].mxu0 %v663
        %v838 = vpop.f32.mrb[0].mxu0
        %v839 = vadd.f32 %v650, %v838
        %v840 = vpop.f32.mrb[0].mxu0
        %v841 = vadd.f32 %v650, %v840
        %842 = vdwg.mxu0
        %v843 = vmax.f32 %v732, 0.0
        %v844 = vmax.f32 %v734, 0.0
        %v845 = vmax.f32 %v821, 0.0
        %v846 = vmax.f32 %v823, 0.0
        %v847 = vmax.f32 %v738, 0.0
        %v848 = vmax.f32 %v740, 0.0
        %v849 = vmax.f32 %v827, 0.0
        %v850 = vmax.f32 %v829, 0.0
        %v851 = vmax.f32 %v744, 0.0
        %v852 = vmax.f32 %v746, 0.0
        %v853 = vmax.f32 %v833, 0.0
        %v854 = vmax.f32 %v835, 0.0
        %v855 = vmax.f32 %v750, 0.0
        %v856 = vmax.f32 %v752, 0.0
        %v857 = vmax.f32 %v839, 0.0
        %v858 = vmax.f32 %v841, 0.0
        %v859 = vsub.f32 %v616, %v618
        %v860 = vsub.f32 %v617, %v619
        %v861 = vsub.f32 %v620, %v622
        %v862 = vsub.f32 %v621, %v623
        %v863 = vsub.f32 %v624, %v626
        %v864 = vsub.f32 %v625, %v627
        %v865 = vsub.f32 %v628, %v630
        %v866 = vsub.f32 %v629, %v631
        %v867 = vsub.f32 %v843, %v845
        %v868 = vsub.f32 %v844, %v846
        %v869 = vsub.f32 %v847, %v849
        %v870 = vsub.f32 %v848, %v850
        %v871 = vsub.f32 %v851, %v853
        %v872 = vsub.f32 %v852, %v854
        %v873 = vsub.f32 %v855, %v857
        %v874 = vsub.f32 %v856, %v858
        %v875 = vmul.f32 %v859, %v859
        %v876 = vmul.f32 %v860, %v860
        %v877 = vmul.f32 %v861, %v861
        %v878 = vmul.f32 %v862, %v862
        %v879 = vmul.f32 %v863, %v863
        %v880 = vmul.f32 %v864, %v864
        %v881 = vmul.f32 %v865, %v865
        %v882 = vmul.f32 %v866, %v866
        %v883 = vadd.f32 %v875, %v877
        %v884 = vadd.f32 %v883, %v879
        %v885 = vadd.f32 %v884, %v881
        %v886 = vrot.slane %v885, 4
        %v887 = vadd.f32 %v885, %v886
        %v888 = vrot.slane %v887, 2
        %v889 = vadd.f32 %v887, %v888
        %v890 = vrot.slane %v889, 1
        %v891 = vadd.f32 %v889, %v890
        %v892 = vadd.f32 %v876, %v878
        %v893 = vadd.f32 %v892, %v880
        %v894 = vadd.f32 %v893, %v882
        %v895 = vrot.slane %v894, 4
        %v896 = vadd.f32 %v894, %v895
        %v897 = vrot.slane %v896, 2
        %v898 = vadd.f32 %v896, %v897
        %v899 = vrot.slane %v898, 1
        %v900 = vadd.f32 %v898, %v899
        %v901 = vmul.f32 %v867, %v867
        %v902 = vmul.f32 %v868, %v868
        %v903 = vmul.f32 %v869, %v869
        %v904 = vmul.f32 %v870, %v870
        %v905 = vmul.f32 %v871, %v871
        %v906 = vmul.f32 %v872, %v872
        %v907 = vmul.f32 %v873, %v873
        %v908 = vmul.f32 %v874, %v874
        %v909 = vadd.f32 %v901, %v903
        %v910 = vadd.f32 %v909, %v905
        %v911 = vadd.f32 %v910, %v907
        %v912 = vrot.slane %v911, 4
        %v913 = vadd.f32 %v911, %v912
        %v914 = vrot.slane %v913, 2
        %v915 = vadd.f32 %v913, %v914
        %v916 = vrot.slane %v915, 1
        %v917 = vadd.f32 %v915, %v916
        %v918 = vadd.f32 %v902, %v904
        %v919 = vadd.f32 %v918, %v906
        %v920 = vadd.f32 %v919, %v908
        %v921 = vrot.slane %v920, 4
        %v922 = vadd.f32 %v920, %v921
        %v923 = vrot.slane %v922, 2
        %v924 = vadd.f32 %v922, %v923
        %v925 = vrot.slane %v924, 1
        %v926 = vadd.f32 %v924, %v925
        %v927 = vld [vmem:[%s6] sm:$0xff]
        %v928 = vld [vmem:[%s7] sm:$0xff]
        %930 = vset.pattern.permute.xlu0 0
        %931 = vperm.xlu0 %930, %v928
        %v932 = vpop.permute.xlu0 %931
        %v935 = vsel %vm652, %v927, 0
        %937 = vmatprep.subr.mxu0 %v844
        %938 = vmatpush1.msra.mxu0 %v843
        %939 = vmatprep.subr.mxu0 %v848
        %940 = vmatpush1.msra.mxu0 %v847
        %941 = vmatprep.subr.mxu0 %v852
        %942 = vmatpush1.msra.mxu0 %v851
        %943 = vmatprep.subr.mxu0 %v856
        %944 = vmatpush1.msra.mxu0 %v855
        %945 = vmatprep.subr.mxu0 0.0
        %946 = vmatpush1.msra.mxu0 0.0
        %947 = vmatprep.subr.mxu0 0.0
        %948 = vmatpush1.msra.mxu0 0.0
        %949 = vmatprep.subr.mxu0 0.0
        %950 = vmatpush1.msra.mxu0 0.0
        %951 = vmatprep.subr.mxu0 0.0
        %952 = vmatpush1.msra.mxu0 0.0
        %953 = vmatprep.subr.mxu0 0.0
        %954 = vmatpush1.msra.mxu0 0.0
        %955 = vmatprep.subr.mxu0 0.0
        %956 = vmatpush1.msra.mxu0 0.0
        %957 = vmatprep.subr.mxu0 0.0
        %958 = vmatpush1.msra.mxu0 0.0
        %959 = vmatprep.subr.mxu0 0.0
        %960 = vmatpush1.msra.mxu0 0.0
        %961 = vmatprep.subr.mxu0 0.0
        %962 = vmatpush1.msra.mxu0 0.0
        %963 = vmatprep.subr.mxu0 0.0
        %964 = vmatpush1.msra.mxu0 0.0
        %965 = vmatprep.subr.mxu0 0.0
        %966 = vmatpush1.msra.mxu0 0.0
        %967 = vmatprep.subr.mxu0 0.0
        %968 = vmatpush1.msra.mxu0 0.0
        %969 = vmatprep.subr.mxu0 0.0
        %970 = vmatpush1.msra.mxu0 0.0
        %971 = vmatprep.subr.mxu0 0.0
        %972 = vmatpush1.msra.mxu0 0.0
        %973 = vmatprep.subr.mxu0 0.0
        %974 = vmatpush1.msra.mxu0 0.0
        %975 = vmatprep.subr.mxu0 0.0
        %976 = vmatpush1.msra.mxu0 0.0
        %977 = vmatprep.subr.mxu0 0.0
        %978 = vmatpush1.msra.mxu0 0.0
        %979 = vmatprep.subr.mxu0 0.0
        %980 = vmatpush1.msra.mxu0 0.0
        %981 = vmatprep.subr.mxu0 0.0
        %982 = vmatpush1.msra.mxu0 0.0
        %983 = vmatprep.subr.mxu0 0.0
        %984 = vmatpush1.msra.mxu0 0.0
        %985 = vmatprep.subr.mxu0 0.0
        %986 = vmatpush1.msra.mxu0 0.0
        %987 = vmatprep.subr.mxu0 0.0
        %988 = vmatpush1.msra.mxu0 0.0
        %989 = vmatprep.subr.mxu0 0.0
        %990 = vmatpush1.msra.mxu0 0.0
        %991 = vmatprep.subr.mxu0 0.0
        %992 = vmatpush1.msra.mxu0 0.0
        %993 = vmatprep.subr.mxu0 0.0
        %994 = vmatpush1.msra.mxu0 0.0
        %995 = vmatprep.subr.mxu0 0.0
        %996 = vmatpush1.msra.mxu0 0.0
        %997 = vmatprep.subr.mxu0 0.0
        %998 = vmatpush1.msra.mxu0 0.0
        %999 = vmatprep.subr.mxu0 0.0
        %1000 = vmatpush1.msra.mxu0 0.0
        %1001 = vmatprep.mubr.f32.mxu0 0.0
        %1002 = vmatmul.mubr.f32.gmra.mrb[0].mxu0 %v935
        %v1003 = vpop.f32.mrb[0].mxu0
        %v1004 = vadd.f32 %v932, %v1003
        %v1005 = vpop.f32.mrb[0].mxu0
        %v1006 = vadd.f32 %v932, %v1005
        %1007 = vdwg.mxu0
        %1008 = vmatprep.subr.mxu0 %v846
        %1009 = vmatpush1.msra.mxu0 %v845
        %1010 = vmatprep.subr.mxu0 %v850
        %1011 = vmatpush1.msra.mxu0 %v849
        %1012 = vmatprep.subr.mxu0 %v854
        %1013 = vmatpush1.msra.mxu0 %v853
        %1014 = vmatprep.subr.mxu0 %v858
        %1015 = vmatpush1.msra.mxu0 %v857
        %1016 = vmatprep.subr.mxu0 0.0
        %1017 = vmatpush1.msra.mxu0 0.0
        %1018 = vmatprep.subr.mxu0 0.0
        %1019 = vmatpush1.msra.mxu0 0.0
        %1020 = vmatprep.subr.mxu0 0.0
        %1021 = vmatpush1.msra.mxu0 0.0
        %1022 = vmatprep.subr.mxu0 0.0
        %1023 = vmatpush1.msra.mxu0 0.0
        %1024 = vmatprep.subr.mxu0 0.0
        %1025 = vmatpush1.msra.mxu0 0.0
        %1026 = vmatprep.subr.mxu0 0.0
        %1027 = vmatpush1.msra.mxu0 0.0
        %1028 = vmatprep.subr.mxu0 0.0
        %1029 = vmatpush1.msra.mxu0 0.0
        %1030 = vmatprep.subr.mxu0 0.0
        %1031 = vmatpush1.msra.mxu0 0.0
        %1032 = vmatprep.subr.mxu0 0.0
        %1033 = vmatpush1.msra.mxu0 0.0
        %1034 = vmatprep.subr.mxu0 0.0
        %1035 = vmatpush1.msra.mxu0 0.0
        %1036 = vmatprep.subr.mxu0 0.0
        %1037 = vmatpush1.msra.mxu0 0.0
        %1038 = vmatprep.subr.mxu0 0.0
        %1039 = vmatpush1.msra.mxu0 0.0
        %1040 = vmatprep.subr.mxu0 0.0
        %1041 = vmatpush1.msra.mxu0 0.0
        %1042 = vmatprep.subr.mxu0 0.0
        %1043 = vmatpush1.msra.mxu0 0.0
        %1044 = vmatprep.subr.mxu0 0.0
        %1045 = vmatpush1.msra.mxu0 0.0
        %1046 = vmatprep.subr.mxu0 0.0
        %1047 = vmatpush1.msra.mxu0 0.0
        %1048 = vmatprep.subr.mxu0 0.0
        %1049 = vmatpush1.msra.mxu0 0.0
        %1050 = vmatprep.subr.mxu0 0.0
        %1051 = vmatpush1.msra.mxu0 0.0
        %1052 = vmatprep.subr.mxu0 0.0
        %1053 = vmatpush1.msra.mxu0 0.0
        %1054 = vmatprep.subr.mxu0 0.0
        %1055 = vmatpush1.msra.mxu0 0.0
        %1056 = vmatprep.subr.mxu0 0.0
        %1057 = vmatpush1.msra.mxu0 0.0
        %1058 = vmatprep.subr.mxu0 0.0
        %1059 = vmatpush1.msra.mxu0 0.0
        %1060 = vmatprep.subr.mxu0 0.0
        %1061 = vmatpush1.msra.mxu0 0.0
        %1062 = vmatprep.subr.mxu0 0.0
        %1063 = vmatpush1.msra.mxu0 0.0
        %1064 = vmatprep.subr.mxu0 0.0
        %1065 = vmatpush1.msra.mxu0 0.0
        %1066 = vmatprep.subr.mxu0 0.0
        %1067 = vmatpush1.msra.mxu0 0.0
        %1068 = vmatprep.subr.mxu0 0.0
        %1069 = vmatpush1.msra.mxu0 0.0
        %1070 = vmatprep.subr.mxu0 0.0
        %1071 = vmatpush1.msra.mxu0 0.0
        %1072 = vmatprep.mubr.f32.mxu0 0.0
        %1073 = vmatmul.mubr.f32.gmra.mrb[0].mxu0 %v935
        %v1074 = vpop.f32.mrb[0].mxu0
        %v1075 = vadd.f32 %v932, %v1074
        %v1076 = vpop.f32.mrb[0].mxu0
        %v1077 = vadd.f32 %v932, %v1076
        %1078 = vdwg.mxu0
        %v1079 = vsub.f32 %v1004, %v1075
        %v1080 = vsub.f32 %v1006, %v1077
        %v1081 = vmul.f32 %v1079, %v1079
        %v1082 = vmul.f32 %v1080, %v1080
        %v1083 = vrot.slane %v1081, 4
        %v1084 = vadd.f32 %v1081, %v1083
        %v1085 = vrot.slane %v1084, 2
        %v1086 = vadd.f32 %v1084, %v1085
        %v1087 = vrot.slane %v1086, 1
        %v1088 = vadd.f32 %v1086, %v1087
        %v1089 = vrot.slane %v1082, 4
        %v1090 = vadd.f32 %v1082, %v1089
        %v1091 = vrot.slane %v1090, 2
        %v1092 = vadd.f32 %v1090, %v1091
        %v1093 = vrot.slane %v1092, 1
        %v1094 = vadd.f32 %v1092, %v1093
        %v1095 = vld [vmem:[%s347] sm:$0xff]
        %v1096 = vld [vmem:[%s347 + $0x8] sm:$0xff]
        %vm1097 = vcmask 1040384
        %v1098 = vsel %vm1097, %v891, %v917
        %v1099 = vsel %vm1097, %v900, %v926
        %vm1100 = vcmask 1041408
        %v1101 = vsel %vm1100, %v1098, %v1088
        %v1102 = vsel %vm1100, %v1099, %v1094
        %vm1103 = vcmask 1042432
        %v1104 = vsel %vm1103, %v1101, 0.0
        %v1105 = vsel %vm1103, %v1102, 0.0
        %v1106 = vadd.f32 %v1095, %v1104
        %v1107 = vadd.f32 %v1096, %v1105
        %1108 = vst [vmem:[%s347] sm:$0xff] %v1106
        %1109 = vst [vmem:[%s347 + $0x8] sm:$0xff] %v1107
        %s1110 = sand.u32 %s224, 1
        %s1111 = scalar_lea.sflag [#allocation3], %s1110
        %s1112 = sand.u32 %s224, 1
        %s1113 = smul.addr %s1112, 16
        %s1114 = scalar_lea.vmem [#allocation2], %s1113
        // Predicated region
        $region57: #{tpu_custom_call.1} parent=51 // pred_check
          %p1115 = pneg %p234
        $region58: #{tpu_custom_call.1} parent=51 // pred_check_branch
          %1117 = sbr.rel (%p1115) target = $region60
        $region59: #{tpu_custom_call.1} parent=51 // pred_region
          %s1119 = ssub.s32 256, 256
          %1120 = vsyncadd %s1111, %s1119
          %s1121 = smul.addr %s26, 2
          %s1122 = smul.addr %s1121, 128
          %s1123 = scalar_lea.hbm %s8, %s1122
          %s1125 = sshll.u32 %s1114, 4
          %s1126 = int_to_ptr.vmem [resolvable:$true] %s1125
          %1128 = dma.vmem_to_hbm [thread:$0]  %s1126, 256, %s1123, %s1111
        $region60: #{tpu_custom_call.1} parent=51 // pred_fallthru
          _
      $region52: #{tpu_custom_call.1} parent=5 // pred_fallthru
        _
      %p1129 = scmp.le.s32.totalorder 2, %s17
      // Predicated region
      $region61: #{tpu_custom_call.1} parent=5 // pred_check
        %p1130 = pneg %p1129
      $region62: #{tpu_custom_call.1} parent=5 // pred_check_branch
        %1132 = sbr.rel (%p1130) target = $region64
      $region63: #{tpu_custom_call.1} parent=5 // pred_region
        %s1133 = ssub.s32 %s17, 2
        // Predicated region
        $region65: #{tpu_custom_call.1} parent=63 // pred_check
          %p1134 = pneg %p240
        $region66: #{tpu_custom_call.1} parent=63 // pred_check_branch
          %1136 = sbr.rel (%p1134) target = $region68
        $region67: #{tpu_custom_call.1} parent=63 // pred_region
          %s1137 = sand.u32 %s225, 1
          %s1138 = scalar_lea.sflag [#allocation3], %s1137
          %s1139 = sand.u32 %s225, 1
          %s1140 = smul.addr %s1139, 16
          %s1141 = scalar_lea.vmem [#allocation2], %s1140
          %1142 = dma.done %s1138, 256
        $region68: #{tpu_custom_call.1} parent=63 // pred_fallthru
          _
      $region64: #{tpu_custom_call.1} parent=5 // pred_fallthru
        _
    $region6: #{tpu_custom_call.1} parent=1 // loop_footer
      %s21 = sadd.s32 1, %s17
    $region7: #{tpu_custom_call.1} parent=1 // loop_footer_branch
      %16 = sbr.rel target = $region3
    $region8: #{tpu_custom_call.1} parent=1 // loop_exit
      _
    %1143 = vsyncpa [#allocation3], 1
    %s1144 = scalar_lea.sflag [#allocation3], 1
    %1145 = vsyncpa %s1144, 1

</llo_original>
